<compile_context>
chip_gen: v6e
topology: v6e:2x2x1
jax: 0.10.0
libtpu: 0.0.40
codegen_flags: <defaults>
</compile_context>

<pallas_src>
import functools

import jax
import jax.numpy as jnp
import numpy as np
from jax import lax
from jax.experimental import pallas as pl
from jax.experimental.pallas import tpu as pltpu


def _gat_encoder_kernel(alpha, eps, N, K, H, offs, x_ref, p_ref, o_ref):
    Bb = x_ref.shape[0]          # batch block
    N2 = 2 * N

    # ---- parameter slices from the single packed VMEM tile (static offsets) ----
    Wlr   = p_ref[offs["wlr"]:offs["wlr"] + N, 0:4 * N]          # (N, 4N)  [Wl^T | Wr^T]
    w1t   = p_ref[offs["w1t"]:offs["w1t"] + K, 0:H]              # (K, H)
    w2t   = p_ref[offs["w2t"]:offs["w2t"] + H, 0:K]              # (H, K)
    ab    = p_ref[offs["abias"]:offs["abias"] + K, 0:K]          # (K, K)
    lin_b = p_ref[offs["lin_b"]:offs["lin_b"] + 1, 0:N2]         # (1, 2N)
    a_row = p_ref[offs["a"]:offs["a"] + 1, 0:N2]                 # (1, 2N)
    g1    = p_ref[offs["ln1_g"]:offs["ln1_g"] + 1, 0:K]          # (1, K)
    bt1   = p_ref[offs["ln1_b"]:offs["ln1_b"] + 1, 0:K]
    fb1   = p_ref[offs["b1"]:offs["b1"] + 1, 0:H]                # (1, H)
    fb2   = p_ref[offs["b2"]:offs["b2"] + 1, 0:K]
    g2    = p_ref[offs["ln2_g"]:offs["ln2_g"] + 1, 0:K]
    bt2   = p_ref[offs["ln2_b"]:offs["ln2_b"] + 1, 0:K]

    X = x_ref[...].astype(jnp.float32)                           # (Bb, N, K)

    # ---- feature-node view x = X^T per sample ---------------------------------
    # Built on the MXU with an identity batched matmul ('bij,bnj->bin' is the
    # natively supported contraction form); avoids a second HBM read of the
    # activations and sub-tile XLU transposes.
    eye_k = (lax.broadcasted_iota(jnp.int32, (K, K), 0) ==
             lax.broadcasted_iota(jnp.int32, (K, K), 1)).astype(jnp.float32)
    eye_b = jnp.broadcast_to(eye_k, (Bb, K, K))
    Xt = jnp.einsum("bij,bnj->bin", eye_b, X,
                    preferred_element_type=jnp.float32)          # (Bb, K, N)

    # ---- GATv2 attention scores ------------------------------------------------
    # lin(concat(x_i, x_j)) = x_i @ Wl^T + x_j @ Wr^T + b ; both projections fused
    # into a single (Bb*K, N) @ (N, 4N) matmul (batch folded into MXU rows).
    LR = jnp.dot(Xt.reshape(Bb * K, N), Wlr,
                 preferred_element_type=jnp.float32)             # (Bb*K, 4N)
    Lp = LR[:, :N2].reshape(Bb, K, N2)                           # (Bb, K, 2N)
    Rp = LR[:, N2:].reshape(Bb, K, N2)                           # (Bb, K, 2N)
    pre = Lp[:, :, None, :] + Rp[:, None, :, :] + lin_b          # (Bb, K, K, 2N)
    act = jnp.where(pre > 0, pre, alpha * pre)                   # LeakyReLU(alpha)
    e = jnp.sum(act * a_row, axis=-1) + ab                       # (Bb, K, K)

    # softmax over the last (j) axis
    e = e - jnp.max(e, axis=-1, keepdims=True)
    p = jnp.exp(e)
    attn = p / jnp.sum(p, axis=-1, keepdims=True)                # (Bb, K, K)

    # h = sigmoid(attn @ x); att_out = h^T  ==  X @ attn^T (batched, MXU-native form)
    att_out = jax.nn.sigmoid(
        jnp.einsum("bnj,bij->bni", X, attn,
                   preferred_element_type=jnp.float32))          # (Bb, N, K)

    def layer_norm(z, g, b):
        mu = jnp.mean(z, axis=-1, keepdims=True)
        d = z - mu
        var = jnp.mean(d * d, axis=-1, keepdims=True)            # biased (torch LN)
        return d * lax.rsqrt(var + eps) * g + b

    # ---- AddNorm1 + PositionWiseFFN + AddNorm2 (batch folded into matmul rows) --
    Y = layer_norm((att_out + X).reshape(Bb * N, K), g1, bt1)    # (Bb*N, K)
    H1 = jnp.maximum(
        jnp.dot(Y, w1t, preferred_element_type=jnp.float32) + fb1, 0.0)   # (Bb*N, H)
    F = jnp.dot(H1, w2t, preferred_element_type=jnp.float32) + fb2        # (Bb*N, K)
    out = layer_norm(F + Y, g2, bt2)                              # (Bb*N, K)

    o_ref[...] = out.reshape(Bb, N, K).astype(o_ref.dtype)


def _pack_params(params, N, K, H, dtype=jnp.float32):
    """Pack all (tiny) parameters into one padded 2D array + static row offsets."""
    W = jnp.asarray(params["lin_w"], dtype)                       # (2N, 2N) torch (out, in)
    segs = [
        ("wlr",   jnp.concatenate([W[:, :N].T, W[:, N:].T], axis=1)),  # (N, 4N)
        ("w1t",   jnp.asarray(params["w1"], dtype).T),                 # (K, H)
        ("w2t",   jnp.asarray(params["w2"], dtype).T),                 # (H, K)
        ("abias", jnp.asarray(params["att_bias"], dtype)),             # (K, K)
        ("lin_b", jnp.asarray(params["lin_b"], dtype).reshape(1, -1)),
        ("a",     jnp.asarray(params["a"], dtype).reshape(1, -1)),
        ("ln1_g", jnp.asarray(params["ln1_g"], dtype).reshape(1, -1)),
        ("ln1_b", jnp.asarray(params["ln1_b"], dtype).reshape(1, -1)),
        ("b1",    jnp.asarray(params["b1"], dtype).reshape(1, -1)),
        ("b2",    jnp.asarray(params["b2"], dtype).reshape(1, -1)),
        ("ln2_g", jnp.asarray(params["ln2_g"], dtype).reshape(1, -1)),
        ("ln2_b", jnp.asarray(params["ln2_b"], dtype).reshape(1, -1)),
    ]
    width = max(int(a.shape[1]) for _, a in segs)
    offs, row = {}, 0
    for name, arr in segs:
        if int(arr.shape[0]) > 1:          # align multi-row segments to sublane tiles
            row = ((row + 7) // 8) * 8
        offs[name] = row
        row += int(arr.shape[0])
    rows = ((row + 7) // 8) * 8
    packed = jnp.zeros((rows, width), dtype)
    for name, arr in segs:
        r = offs[name]
        packed = packed.at[r:r + arr.shape[0], :arr.shape[1]].set(arr)
    return packed, offs


def _pick_batch_block(B, cap=32):
    """Largest divisor of B that is <= cap (amortizes per-grid-step overhead)."""
    best = 1
    for d in range(1, min(B, cap) + 1):
        if B % d == 0:
            best = d
    return best


def gat_encoder_block(X, params, alpha=0.2, eps=1e-5):
    B, N, K = X.shape
    H = params["w1"].shape[0]

    packed, offs = _pack_params(params, N, K, H)
    Bblk = _pick_batch_block(B)
    grid = (B // Bblk,)

    kernel = functools.partial(_gat_encoder_kernel, float(alpha), float(eps),
                               N, K, H, offs)
    return pl.pallas_call(
        kernel,
        out_shape=jax.ShapeDtypeStruct((B, N, K), X.dtype),
        grid=grid,
        in_specs=[
            pl.BlockSpec((Bblk, N, K), lambda g: (g, 0, 0)),     # activations
            pl.BlockSpec(packed.shape, lambda g: (0, 0)),        # packed parameters
        ],
        out_specs=pl.BlockSpec((Bblk, N, K), lambda g: (g, 0, 0)),
        compiler_params=pltpu.CompilerParams(dimension_semantics=("parallel",)),
    )(X, packed)


def reference(X, params, alpha=0.2, eps=1e-5):
    """Pure-JAX mirror of the PyTorch forward (eval mode, dropout = identity)."""
    B, N, K = X.shape
    x = jnp.transpose(X, (0, 2, 1))                                 # (B, K, N)
    rep = jnp.repeat(x, K, axis=1)                                  # repeat_interleave
    alt = jnp.tile(x, (1, K, 1))                                    # repeat
    comb = jnp.concatenate([rep, alt], axis=2).reshape(B, K, K, 2 * N)
    lin = comb @ params["lin_w"].T + params["lin_b"]
    act = jnp.where(lin > 0, lin, alpha * lin)
    e = jnp.squeeze(act @ params["a"], -1) + params["att_bias"]
    attn = jax.nn.softmax(e, axis=2)
    h = jax.nn.sigmoid(attn @ x)                                    # (B, K, N)
    att_out = jnp.transpose(h, (0, 2, 1))                           # (B, N, K)

    def ln(z, g, b):
        mu = z.mean(-1, keepdims=True)
        v = ((z - mu) ** 2).mean(-1, keepdims=True)
        return (z - mu) / jnp.sqrt(v + eps) * g + b

    Y = ln(att_out + X, params["ln1_g"], params["ln1_b"])
    Hh = jax.nn.relu(Y @ params["w1"].T + params["b1"])
    F = Hh @ params["w2"].T + params["b2"]
    return ln(F + Y, params["ln2_g"], params["ln2_b"])


if __name__ == "__main__":
    # Small shapes consistent with the module:
    # batch=2, window_size=8, n_features=4, ffn_num_hiddens=32,
    # norm_shape_gat=(n_features,), ffn_num_gat=n_features, alpha=0.2.
    B, N, K, H = 2, 8, 4, 32
    alpha = 0.2

    key = jax.random.PRNGKey(0)
    ks = jax.random.split(key, 13)
    params = {
        "lin_w": 0.2 * jax.random.normal(ks[0], (2 * N, 2 * N), jnp.float32),
        "lin_b": 0.1 * jax.random.normal(ks[1], (2 * N,), jnp.float32),
        "a": 0.2 * jax.random.normal(ks[2], (2 * N, 1), jnp.float32),
        "att_bias": 0.1 * jax.random.normal(ks[3], (K, K), jnp.float32),
        "ln1_g": 1.0 + 0.1 * jax.random.normal(ks[4], (K,), jnp.float32),
        "ln1_b": 0.1 * jax.random.normal(ks[5], (K,), jnp.float32),
        "w1": 0.2 * jax.random.normal(ks[6], (H, K), jnp.float32),
        "b1": 0.1 * jax.random.normal(ks[7], (H,), jnp.float32),
        "w2": 0.2 * jax.random.normal(ks[8], (K, H), jnp.float32),
        "b2": 0.1 * jax.random.normal(ks[9], (K,), jnp.float32),
        "ln2_g": 1.0 + 0.1 * jax.random.normal(ks[10], (K,), jnp.float32),
        "ln2_b": 0.1 * jax.random.normal(ks[11], (K,), jnp.float32),
    }
    X = jax.random.normal(ks[12], (B, N, K), jnp.float32)

    out = jax.block_until_ready(gat_encoder_block(X, params, alpha=alpha))
    ref = jax.block_until_ready(reference(X, params, alpha=alpha))

    assert out.shape == (B, N, K)
    np.testing.assert_allclose(np.asarray(out), np.asarray(ref), rtol=1e-4, atol=1e-4)
    print("KERNEL_OK")
</pallas_src>

<mosaic_0001>
module attributes {stable_mosaic.version = 11 : i64} {
  func.func @_gat_encoder_kernel(%arg0: i32, %arg1: memref<2x8x4xf32, #tpu.memory_space<vmem>>, %arg2: memref<64x32xf32, #tpu.memory_space<vmem>>, %arg3: memref<2x8x4xf32, #tpu.memory_space<vmem>>) attributes {dimension_semantics = [#tpu.dimension_semantics<parallel>], iteration_bounds = array<i64: 1>, scalar_prefetch = 0 : i64, scratch_operands = 0 : i64, tpu.core_type = #tpu.core_type<tc>, window_params = [{transform_indices = @transform_0, window_bounds = array<i64: 2, 8, 4>}, {pipeline_mode = #tpu.pipeline_mode<synchronous>, transform_indices = @transform_1, window_bounds = array<i64: 64, 32>}, {transform_indices = @transform_2, window_bounds = array<i64: 2, 8, 4>}]} {
    %c0 = arith.constant 0 : index
    %c0_0 = arith.constant 0 : index
    %0 = vector.load %arg2[%c0, %c0_0] : memref<64x32xf32, #tpu.memory_space<vmem>>, vector<8x32xf32>
    %c8 = arith.constant 8 : index
    %c0_1 = arith.constant 0 : index
    %1 = vector.load %arg2[%c8, %c0_1] : memref<64x32xf32, #tpu.memory_space<vmem>>, vector<4x32xf32>
    %c16 = arith.constant 16 : index
    %c0_2 = arith.constant 0 : index
    %2 = vector.load %arg2[%c16, %c0_2] : memref<64x32xf32, #tpu.memory_space<vmem>>, vector<32x4xf32>
    %c48 = arith.constant 48 : index
    %c0_3 = arith.constant 0 : index
    %3 = vector.load %arg2[%c48, %c0_3] : memref<64x32xf32, #tpu.memory_space<vmem>>, vector<4x4xf32>
    %c52 = arith.constant 52 : index
    %c0_4 = arith.constant 0 : index
    %4 = vector.load %arg2[%c52, %c0_4] : memref<64x32xf32, #tpu.memory_space<vmem>>, vector<1x16xf32>
    %c53 = arith.constant 53 : index
    %c0_5 = arith.constant 0 : index
    %5 = vector.load %arg2[%c53, %c0_5] : memref<64x32xf32, #tpu.memory_space<vmem>>, vector<1x16xf32>
    %c54 = arith.constant 54 : index
    %c0_6 = arith.constant 0 : index
    %6 = vector.load %arg2[%c54, %c0_6] : memref<64x32xf32, #tpu.memory_space<vmem>>, vector<1x4xf32>
    %c55 = arith.constant 55 : index
    %c0_7 = arith.constant 0 : index
    %7 = vector.load %arg2[%c55, %c0_7] : memref<64x32xf32, #tpu.memory_space<vmem>>, vector<1x4xf32>
    %c56 = arith.constant 56 : index
    %c0_8 = arith.constant 0 : index
    %8 = vector.load %arg2[%c56, %c0_8] : memref<64x32xf32, #tpu.memory_space<vmem>>, vector<1x32xf32>
    %c57 = arith.constant 57 : index
    %c0_9 = arith.constant 0 : index
    %9 = vector.load %arg2[%c57, %c0_9] : memref<64x32xf32, #tpu.memory_space<vmem>>, vector<1x4xf32>
    %c58 = arith.constant 58 : index
    %c0_10 = arith.constant 0 : index
    %10 = vector.load %arg2[%c58, %c0_10] : memref<64x32xf32, #tpu.memory_space<vmem>>, vector<1x4xf32>
    %c59 = arith.constant 59 : index
    %c0_11 = arith.constant 0 : index
    %11 = vector.load %arg2[%c59, %c0_11] : memref<64x32xf32, #tpu.memory_space<vmem>>, vector<1x4xf32>
    %c0_12 = arith.constant 0 : index
    %c0_13 = arith.constant 0 : index
    %c0_14 = arith.constant 0 : index
    %12 = vector.load %arg1[%c0_12, %c0_13, %c0_14] : memref<2x8x4xf32, #tpu.memory_space<vmem>>, vector<2x8x4xf32>
    %13 = tpu.iota {dimensions = array<i32: 0>} : vector<4x4xi32>
    %14 = tpu.iota {dimensions = array<i32: 1>} : vector<4x4xi32>
    %15 = arith.cmpi eq, %13, %14 : vector<4x4xi32>
    %16 = arith.extui %15 : vector<4x4xi1> to vector<4x4xi32>
    %17 = arith.sitofp %16 : vector<4x4xi32> to vector<4x4xf32>
    %18 = vector.shape_cast %17 : vector<4x4xf32> to vector<1x4x4xf32>
    %19 = vector.broadcast %18 : vector<1x4x4xf32> to vector<2x4x4xf32>
    "tpu.trace_start"() <{level = 10 : i32, message = "bij,bnj->bin"}> : () -> ()
    %cst = arith.constant dense<0.000000e+00> : vector<2x4x8xf32>
    %20 = tpu.matmul %19, %12, %cst {dimension_numbers = #tpu.dot_dimension_numbers<[2], [2], [1], [1], [0, 0, 0, 1, 1, 1], [0], [0]>} : vector<2x4x4xf32>, vector<2x8x4xf32>, vector<2x4x8xf32> -> vector<2x4x8xf32>
    "tpu.trace_stop"() : () -> ()
    %21 = vector.shape_cast %20 : vector<2x4x8xf32> to vector<8x8xf32>
    %cst_15 = arith.constant dense<0.000000e+00> : vector<8x32xf32>
    %22 = tpu.matmul %21, %0, %cst_15 {dimension_numbers = #tpu.dot_dimension_numbers<[1], [0], [0], [1], [0, 0, 1, 1], [], []>} : vector<8x8xf32>, vector<8x32xf32>, vector<8x32xf32> -> vector<8x32xf32>
    %23 = vector.extract_strided_slice %22 {offsets = [0, 0], sizes = [8, 16], strides = [1, 1]} : vector<8x32xf32> to vector<8x16xf32>
    %24 = vector.shape_cast %23 : vector<8x16xf32> to vector<2x4x16xf32>
    %25 = vector.extract_strided_slice %22 {offsets = [0, 16], sizes = [8, 16], strides = [1, 1]} : vector<8x32xf32> to vector<8x16xf32>
    %26 = vector.shape_cast %25 : vector<8x16xf32> to vector<2x4x16xf32>
    %27 = vector.shape_cast %24 : vector<2x4x16xf32> to vector<2x4x1x16xf32>
    %28 = vector.shape_cast %26 : vector<2x4x16xf32> to vector<2x1x4x16xf32>
    %29 = vector.broadcast %27 : vector<2x4x1x16xf32> to vector<2x4x4x16xf32>
    %30 = vector.broadcast %28 : vector<2x1x4x16xf32> to vector<2x4x4x16xf32>
    %31 = arith.addf %29, %30 : vector<2x4x4x16xf32>
    %32 = vector.shape_cast %4 : vector<1x16xf32> to vector<1x1x1x16xf32>
    %33 = vector.broadcast %32 : vector<1x1x1x16xf32> to vector<2x4x4x16xf32>
    %34 = arith.addf %31, %33 : vector<2x4x4x16xf32>
    %cst_16 = arith.constant 0.000000e+00 : f32
    %35 = vector.broadcast %cst_16 : f32 to vector<2x4x4x16xf32>
    %36 = arith.cmpf ogt, %34, %35 : vector<2x4x4x16xf32>
    %cst_17 = arith.constant 2.000000e-01 : f32
    %37 = vector.broadcast %cst_17 : f32 to vector<2x4x4x16xf32>
    %38 = arith.mulf %37, %34 : vector<2x4x4x16xf32>
    %39 = arith.select %36, %34, %38 : vector<2x4x4x16xi1>, vector<2x4x4x16xf32>
    %40 = vector.shape_cast %5 : vector<1x16xf32> to vector<1x1x1x16xf32>
    %41 = vector.broadcast %40 : vector<1x1x1x16xf32> to vector<2x4x4x16xf32>
    %42 = arith.mulf %39, %41 : vector<2x4x4x16xf32>
    %cst_18 = arith.constant dense<0.000000e+00> : vector<2x4x4xf32>
    %43 = vector.multi_reduction <add>, %42, %cst_18 [3] : vector<2x4x4x16xf32> to vector<2x4x4xf32>
    %44 = vector.shape_cast %3 : vector<4x4xf32> to vector<1x4x4xf32>
    %45 = vector.broadcast %44 : vector<1x4x4xf32> to vector<2x4x4xf32>
    %46 = arith.addf %43, %45 : vector<2x4x4xf32>
    %cst_19 = arith.constant dense<0xFF800000> : vector<2x4xf32>
    %47 = vector.multi_reduction <maximumf>, %46, %cst_19 [2] : vector<2x4x4xf32> to vector<2x4xf32>
    %48 = vector.shape_cast %47 : vector<2x4xf32> to vector<2x4x1xf32>
    %49 = vector.broadcast %48 : vector<2x4x1xf32> to vector<2x4x4xf32>
    %50 = arith.subf %46, %49 : vector<2x4x4xf32>
    %51 = math.exp %50 : vector<2x4x4xf32>
    %cst_20 = arith.constant dense<0.000000e+00> : vector<2x4xf32>
    %52 = vector.multi_reduction <add>, %51, %cst_20 [2] : vector<2x4x4xf32> to vector<2x4xf32>
    %53 = vector.shape_cast %52 : vector<2x4xf32> to vector<2x4x1xf32>
    %54 = vector.broadcast %53 : vector<2x4x1xf32> to vector<2x4x4xf32>
    %55 = arith.divf %51, %54 : vector<2x4x4xf32>
    "tpu.trace_start"() <{level = 10 : i32, message = "bnj,bij->bni"}> : () -> ()
    %cst_21 = arith.constant dense<0.000000e+00> : vector<2x8x4xf32>
    %56 = tpu.matmul %12, %55, %cst_21 {dimension_numbers = #tpu.dot_dimension_numbers<[2], [2], [1], [1], [0, 0, 0, 1, 1, 1], [0], [0]>} : vector<2x8x4xf32>, vector<2x4x4xf32>, vector<2x8x4xf32> -> vector<2x8x4xf32>
    "tpu.trace_stop"() : () -> ()
    %57 = arith.negf %56 : vector<2x8x4xf32>
    %58 = math.exp %57 : vector<2x8x4xf32>
    %cst_22 = arith.constant 1.000000e+00 : f32
    %59 = vector.broadcast %cst_22 : f32 to vector<2x8x4xf32>
    %60 = arith.addf %59, %58 : vector<2x8x4xf32>
    %61 = arith.divf %59, %60 : vector<2x8x4xf32>
    %62 = arith.addf %61, %12 : vector<2x8x4xf32>
    %63 = vector.shape_cast %62 : vector<2x8x4xf32> to vector<16x4xf32>
    %cst_23 = arith.constant dense<0.000000e+00> : vector<16xf32>
    %64 = vector.multi_reduction <add>, %63, %cst_23 [1] : vector<16x4xf32> to vector<16xf32>
    %65 = vector.shape_cast %64 : vector<16xf32> to vector<16x1xf32>
    %cst_24 = arith.constant 4.000000e+00 : f32
    %66 = vector.broadcast %cst_24 : f32 to vector<16x1xf32>
    %67 = arith.divf %65, %66 : vector<16x1xf32>
    %68 = vector.broadcast %67 : vector<16x1xf32> to vector<16x4xf32>
    %69 = arith.subf %63, %68 : vector<16x4xf32>
    %70 = arith.mulf %69, %69 : vector<16x4xf32>
    %cst_25 = arith.constant dense<0.000000e+00> : vector<16xf32>
    %71 = vector.multi_reduction <add>, %70, %cst_25 [1] : vector<16x4xf32> to vector<16xf32>
    %72 = vector.shape_cast %71 : vector<16xf32> to vector<16x1xf32>
    %cst_26 = arith.constant 4.000000e+00 : f32
    %73 = vector.broadcast %cst_26 : f32 to vector<16x1xf32>
    %74 = arith.divf %72, %73 : vector<16x1xf32>
    %cst_27 = arith.constant 9.99999974E-6 : f32
    %75 = vector.broadcast %cst_27 : f32 to vector<16x1xf32>
    %76 = arith.addf %74, %75 : vector<16x1xf32>
    %77 = math.rsqrt %76 : vector<16x1xf32>
    %78 = vector.broadcast %77 : vector<16x1xf32> to vector<16x4xf32>
    %79 = arith.mulf %69, %78 : vector<16x4xf32>
    %80 = vector.broadcast %6 : vector<1x4xf32> to vector<16x4xf32>
    %81 = arith.mulf %79, %80 : vector<16x4xf32>
    %82 = vector.broadcast %7 : vector<1x4xf32> to vector<16x4xf32>
    %83 = arith.addf %81, %82 : vector<16x4xf32>
    %cst_28 = arith.constant dense<0.000000e+00> : vector<16x32xf32>
    %84 = tpu.matmul %83, %1, %cst_28 {dimension_numbers = #tpu.dot_dimension_numbers<[1], [0], [0], [1], [0, 0, 1, 1], [], []>} : vector<16x4xf32>, vector<4x32xf32>, vector<16x32xf32> -> vector<16x32xf32>
    %85 = vector.broadcast %8 : vector<1x32xf32> to vector<16x32xf32>
    %86 = arith.addf %84, %85 : vector<16x32xf32>
    %cst_29 = arith.constant 0.000000e+00 : f32
    %87 = vector.broadcast %cst_29 : f32 to vector<16x32xf32>
    %88 = arith.maximumf %86, %87 : vector<16x32xf32>
    %cst_30 = arith.constant dense<0.000000e+00> : vector<16x4xf32>
    %89 = tpu.matmul %88, %2, %cst_30 {dimension_numbers = #tpu.dot_dimension_numbers<[1], [0], [0], [1], [0, 0, 1, 1], [], []>} : vector<16x32xf32>, vector<32x4xf32>, vector<16x4xf32> -> vector<16x4xf32>
    %90 = vector.broadcast %9 : vector<1x4xf32> to vector<16x4xf32>
    %91 = arith.addf %89, %90 : vector<16x4xf32>
    %92 = arith.addf %91, %83 : vector<16x4xf32>
    %cst_31 = arith.constant dense<0.000000e+00> : vector<16xf32>
    %93 = vector.multi_reduction <add>, %92, %cst_31 [1] : vector<16x4xf32> to vector<16xf32>
    %94 = vector.shape_cast %93 : vector<16xf32> to vector<16x1xf32>
    %cst_32 = arith.constant 4.000000e+00 : f32
    %95 = vector.broadcast %cst_32 : f32 to vector<16x1xf32>
    %96 = arith.divf %94, %95 : vector<16x1xf32>
    %97 = vector.broadcast %96 : vector<16x1xf32> to vector<16x4xf32>
    %98 = arith.subf %92, %97 : vector<16x4xf32>
    %99 = arith.mulf %98, %98 : vector<16x4xf32>
    %cst_33 = arith.constant dense<0.000000e+00> : vector<16xf32>
    %100 = vector.multi_reduction <add>, %99, %cst_33 [1] : vector<16x4xf32> to vector<16xf32>
    %101 = vector.shape_cast %100 : vector<16xf32> to vector<16x1xf32>
    %cst_34 = arith.constant 4.000000e+00 : f32
    %102 = vector.broadcast %cst_34 : f32 to vector<16x1xf32>
    %103 = arith.divf %101, %102 : vector<16x1xf32>
    %cst_35 = arith.constant 9.99999974E-6 : f32
    %104 = vector.broadcast %cst_35 : f32 to vector<16x1xf32>
    %105 = arith.addf %103, %104 : vector<16x1xf32>
    %106 = math.rsqrt %105 : vector<16x1xf32>
    %107 = vector.broadcast %106 : vector<16x1xf32> to vector<16x4xf32>
    %108 = arith.mulf %98, %107 : vector<16x4xf32>
    %109 = vector.broadcast %10 : vector<1x4xf32> to vector<16x4xf32>
    %110 = arith.mulf %108, %109 : vector<16x4xf32>
    %111 = vector.broadcast %11 : vector<1x4xf32> to vector<16x4xf32>
    %112 = arith.addf %110, %111 : vector<16x4xf32>
    %113 = vector.shape_cast %112 : vector<16x4xf32> to vector<2x8x4xf32>
    %c0_36 = arith.constant 0 : index
    %c0_37 = arith.constant 0 : index
    %c0_38 = arith.constant 0 : index
    %114 = vector.load %arg3[%c0_36, %c0_37, %c0_38] : memref<2x8x4xf32, #tpu.memory_space<vmem>>, vector<2x8x4xf32>
    tpu.vector_store %arg3[%c0_36, %c0_37, %c0_38], %113 {strides = array<i32>} : memref<2x8x4xf32, #tpu.memory_space<vmem>>, vector<2x8x4xf32>,
    return
  }
  func.func @transform_0(%arg0: i32) -> (i32, i32, i32) {
    %c0_i32 = arith.constant 0 : i32
    %c0_i32_0 = arith.constant 0 : i32
    %c0_i32_1 = arith.constant 0 : i32
    return %arg0, %c0_i32, %c0_i32_0 : i32, i32, i32
  }
  func.func @transform_1(%arg0: i32) -> (i32, i32) {
    %c0_i32 = arith.constant 0 : i32
    %c0_i32_0 = arith.constant 0 : i32
    %c0_i32_1 = arith.constant 0 : i32
    return %c0_i32, %c0_i32_0 : i32, i32
  }
  func.func @transform_2(%arg0: i32) -> (i32, i32, i32) {
    %c0_i32 = arith.constant 0 : i32
    %c0_i32_0 = arith.constant 0 : i32
    %c0_i32_1 = arith.constant 0 : i32
    return %arg0, %c0_i32, %c0_i32_0 : i32, i32, i32
  }
}

</mosaic_0001>

<llo_original>
// kernel: tpu_custom_call.1
$region0: #{tpu_custom_call.1}
  #allocation0 [shape = 'u32[]', space=smem, size = 0x4, offset = 0x4, fixed_abs, tag = 'smem constant byte address 0x4 - core index']
  #allocation1 [shape = 'u32[144,128]{1,0:T(1,128)}', space=vmem, size = 0x12000, scoped, tag = 'internal scratch']
  %s0 = inlined_call_operand.vmem [shape: f32[2,8,4], index: 0, kind: input, shape index: {}]
  %s1 = inlined_call_operand.vmem [shape: f32[64,32], index: 1, kind: input, shape index: {}]
  %s2 = inlined_call_operand.vmem [shape: f32[2,8,4], index: 2, kind: output, shape index: {}]
  %s3 = sld [smem:[#allocation0]]
  $region18: #{tpu_custom_call.1} parent=0
    _
  %s5 = ssub.s32 1, %s3
  %s6 = scalar_select 0, %s5, %s3
  // Predicated region
  $region2: #{tpu_custom_call.1} parent=0 // pred_check
    _
  $region3: #{tpu_custom_call.1} parent=0 // pred_check_branch
    %8 = sbr.rel (0) target = $region5
  $region4: #{tpu_custom_call.1} parent=0 // pred_region
    _
  $region5: #{tpu_custom_call.1} parent=0 // pred_fallthru
    _
  // Predicated region
  $region6: #{tpu_custom_call.1} parent=0 // pred_check
    _
  $region7: #{tpu_custom_call.1} parent=0 // pred_check_branch
    %10 = sbr.rel (0) target = $region9
  $region8: #{tpu_custom_call.1} parent=0 // pred_region
    _
  $region9: #{tpu_custom_call.1} parent=0 // pred_fallthru
    _
  %v11 = vld [vmem:[%s1] sm:$0xff]
  %v12 = vld [vmem:[%s1 + $0x8] sm:$0xf]
  %v13 = vld [vmem:[%s1 + $0x10] sm:$0xff]
  %v14 = vld [vmem:[%s1 + $0x18] sm:$0xff]
  %v15 = vld [vmem:[%s1 + $0x20] sm:$0xff]
  %v16 = vld [vmem:[%s1 + $0x28] sm:$0xff]
  %v17 = vld [vmem:[%s1 + $0x30] sm:$0xf]
  %v18 = vld [vmem:[%s1 + $0x34] sm:$0x1]
  %v19 = vld [vmem:[%s1 + $0x35] sm:$0x1]
  %v20 = vld [vmem:[%s1 + $0x36] sm:$0x1]
  %v21 = vld [vmem:[%s1 + $0x37] sm:$0x1]
  %v22 = vld [vmem:[%s1 + $0x38] sm:$0x1]
  %v23 = vld [vmem:[%s1 + $0x39] sm:$0x1]
  %v24 = vld [vmem:[%s1 + $0x3a] sm:$0x1]
  %v25 = vld [vmem:[%s1 + $0x3b] sm:$0x1]
  %v26 = vld [vmem:[%s0] sm:$0xff]
  %v27 = vld [vmem:[%s0 + $0x8] sm:$0xff]
  %v28 = vlaneseq
  %v29 = vshrl.u32 %v28, 7
  %v30 = vlaneseq
  %v31 = vand.u32 %v30, 127
  %vm32 = vcmp.eq.s32.totalorder %v29, %v31
  %v33 = vsel %vm32, 1, 0
  %v34 = vcvt.s32.f32 %v33
  %vm35 = vcmask 31744
  %v37 = vsel %vm35, %v34, 0
  %v40 = vsel %vm35, %v26, 0
  %42 = vmatprep.subr.mxu0 0.0
  %43 = vmatpush1.xpose.msra.mxu0 0.0
  %44 = vmatprep.subr.mxu0 0.0
  %45 = vmatpush1.xpose.msra.mxu0 0.0
  %46 = vmatprep.subr.mxu0 0.0
  %47 = vmatpush1.xpose.msra.mxu0 0.0
  %48 = vmatprep.subr.mxu0 0.0
  %49 = vmatpush1.xpose.msra.mxu0 0.0
  %50 = vmatprep.subr.mxu0 0.0
  %51 = vmatpush1.xpose.msra.mxu0 0.0
  %52 = vmatprep.subr.mxu0 0.0
  %53 = vmatpush1.xpose.msra.mxu0 0.0
  %54 = vmatprep.subr.mxu0 0.0
  %55 = vmatpush1.xpose.msra.mxu0 0.0
  %56 = vmatprep.subr.mxu0 0.0
  %57 = vmatpush1.xpose.msra.mxu0 0.0
  %58 = vmatprep.subr.mxu0 0.0
  %59 = vmatpush1.xpose.msra.mxu0 0.0
  %60 = vmatprep.subr.mxu0 0.0
  %61 = vmatpush1.xpose.msra.mxu0 0.0
  %62 = vmatprep.subr.mxu0 0.0
  %63 = vmatpush1.xpose.msra.mxu0 0.0
  %64 = vmatprep.subr.mxu0 0.0
  %65 = vmatpush1.xpose.msra.mxu0 0.0
  %66 = vmatprep.subr.mxu0 0.0
  %67 = vmatpush1.xpose.msra.mxu0 0.0
  %68 = vmatprep.subr.mxu0 0.0
  %69 = vmatpush1.xpose.msra.mxu0 0.0
  %70 = vmatprep.subr.mxu0 0.0
  %71 = vmatpush1.xpose.msra.mxu0 0.0
  %72 = vmatprep.subr.mxu0 0.0
  %73 = vmatpush1.xpose.msra.mxu0 %v40
  %74 = vmatprep.subr.mxu0 0.0
  %75 = vmatpush2.xpose.msra.mxu0 0.0
  %76 = vmatprep.subr.mxu0 0.0
  %77 = vmatpush2.xpose.msra.mxu0 0.0
  %78 = vmatprep.subr.mxu0 0.0
  %79 = vmatpush2.xpose.msra.mxu0 0.0
  %80 = vmatprep.subr.mxu0 0.0
  %81 = vmatpush2.xpose.msra.mxu0 0.0
  %82 = vmatprep.subr.mxu0 0.0
  %83 = vmatpush2.xpose.msra.mxu0 0.0
  %84 = vmatprep.subr.mxu0 0.0
  %85 = vmatpush2.xpose.msra.mxu0 0.0
  %86 = vmatprep.subr.mxu0 0.0
  %87 = vmatpush2.xpose.msra.mxu0 0.0
  %88 = vmatprep.subr.mxu0 0.0
  %89 = vmatpush2.xpose.msra.mxu0 0.0
  %90 = vmatprep.subr.mxu0 0.0
  %91 = vmatpush2.xpose.msra.mxu0 0.0
  %92 = vmatprep.subr.mxu0 0.0
  %93 = vmatpush2.xpose.msra.mxu0 0.0
  %94 = vmatprep.subr.mxu0 0.0
  %95 = vmatpush2.xpose.msra.mxu0 0.0
  %96 = vmatprep.subr.mxu0 0.0
  %97 = vmatpush2.xpose.msra.mxu0 0.0
  %98 = vmatprep.subr.mxu0 0.0
  %99 = vmatpush2.xpose.msra.mxu0 0.0
  %100 = vmatprep.subr.mxu0 0.0
  %101 = vmatpush2.xpose.msra.mxu0 0.0
  %102 = vmatprep.subr.mxu0 0.0
  %103 = vmatpush2.xpose.msra.mxu0 0.0
  %104 = vmatprep.subr.mxu0 0.0
  %105 = vmatpush2.xpose.msra.mxu0 0.0
  %106 = vmatprep.mubr.f32.mxu0 0.0
  %107 = vmatmul.mubr.f32.gmra.mxu0 %v37
  %v108 = vpop.f32.mrf.mxu0
  %v109 = vadd.f32 0.0, %v108
  %v110 = vpop.f32.mrf.mxu0
  %111 = vdwg.mxu0
  %v113 = vsel %vm35, %v27, 0
  %115 = vmatprep.subr.mxu0 0.0
  %116 = vmatpush1.xpose.msra.mxu0 0.0
  %117 = vmatprep.subr.mxu0 0.0
  %118 = vmatpush1.xpose.msra.mxu0 0.0
  %119 = vmatprep.subr.mxu0 0.0
  %120 = vmatpush1.xpose.msra.mxu0 0.0
  %121 = vmatprep.subr.mxu0 0.0
  %122 = vmatpush1.xpose.msra.mxu0 0.0
  %123 = vmatprep.subr.mxu0 0.0
  %124 = vmatpush1.xpose.msra.mxu0 0.0
  %125 = vmatprep.subr.mxu0 0.0
  %126 = vmatpush1.xpose.msra.mxu0 0.0
  %127 = vmatprep.subr.mxu0 0.0
  %128 = vmatpush1.xpose.msra.mxu0 0.0
  %129 = vmatprep.subr.mxu0 0.0
  %130 = vmatpush1.xpose.msra.mxu0 0.0
  %131 = vmatprep.subr.mxu0 0.0
  %132 = vmatpush1.xpose.msra.mxu0 0.0
  %133 = vmatprep.subr.mxu0 0.0
  %134 = vmatpush1.xpose.msra.mxu0 0.0
  %135 = vmatprep.subr.mxu0 0.0
  %136 = vmatpush1.xpose.msra.mxu0 0.0
  %137 = vmatprep.subr.mxu0 0.0
  %138 = vmatpush1.xpose.msra.mxu0 0.0
  %139 = vmatprep.subr.mxu0 0.0
  %140 = vmatpush1.xpose.msra.mxu0 0.0
  %141 = vmatprep.subr.mxu0 0.0
  %142 = vmatpush1.xpose.msra.mxu0 0.0
  %143 = vmatprep.subr.mxu0 0.0
  %144 = vmatpush1.xpose.msra.mxu0 0.0
  %145 = vmatprep.subr.mxu0 0.0
  %146 = vmatpush1.xpose.msra.mxu0 %v113
  %147 = vmatprep.subr.mxu0 0.0
  %148 = vmatpush2.xpose.msra.mxu0 0.0
  %149 = vmatprep.subr.mxu0 0.0
  %150 = vmatpush2.xpose.msra.mxu0 0.0
  %151 = vmatprep.subr.mxu0 0.0
  %152 = vmatpush2.xpose.msra.mxu0 0.0
  %153 = vmatprep.subr.mxu0 0.0
  %154 = vmatpush2.xpose.msra.mxu0 0.0
  %155 = vmatprep.subr.mxu0 0.0
  %156 = vmatpush2.xpose.msra.mxu0 0.0
  %157 = vmatprep.subr.mxu0 0.0
  %158 = vmatpush2.xpose.msra.mxu0 0.0
  %159 = vmatprep.subr.mxu0 0.0
  %160 = vmatpush2.xpose.msra.mxu0 0.0
  %161 = vmatprep.subr.mxu0 0.0
  %162 = vmatpush2.xpose.msra.mxu0 0.0
  %163 = vmatprep.subr.mxu0 0.0
  %164 = vmatpush2.xpose.msra.mxu0 0.0
  %165 = vmatprep.subr.mxu0 0.0
  %166 = vmatpush2.xpose.msra.mxu0 0.0
  %167 = vmatprep.subr.mxu0 0.0
  %168 = vmatpush2.xpose.msra.mxu0 0.0
  %169 = vmatprep.subr.mxu0 0.0
  %170 = vmatpush2.xpose.msra.mxu0 0.0
  %171 = vmatprep.subr.mxu0 0.0
  %172 = vmatpush2.xpose.msra.mxu0 0.0
  %173 = vmatprep.subr.mxu0 0.0
  %174 = vmatpush2.xpose.msra.mxu0 0.0
  %175 = vmatprep.subr.mxu0 0.0
  %176 = vmatpush2.xpose.msra.mxu0 0.0
  %177 = vmatprep.subr.mxu0 0.0
  %178 = vmatpush2.xpose.msra.mxu0 0.0
  %179 = vmatprep.mubr.f32.mxu0 0.0
  %180 = vmatmul.mubr.f32.gmra.mxu0 %v37
  %v181 = vpop.f32.mrf.mxu0
  %v182 = vadd.f32 0.0, %v181
  %v183 = vpop.f32.mrf.mxu0
  %184 = vdwg.mxu0
  %v187 = vcombine.low %v109, %v182
  %vm188 = vcmask 64512
  %v189 = vsel %vm188, %v187, 0
  %191 = vmatprep.subr.mxu0 0.0
  %192 = vmatpush1.msra.mxu0 0.0
  %193 = vmatprep.subr.mxu0 0.0
  %194 = vmatpush1.msra.mxu0 0.0
  %195 = vmatprep.subr.mxu0 0.0
  %196 = vmatpush1.msra.mxu0 0.0
  %197 = vmatprep.subr.mxu0 0.0
  %198 = vmatpush1.msra.mxu0 0.0
  %199 = vmatprep.subr.mxu0 0.0
  %200 = vmatpush1.msra.mxu0 0.0
  %201 = vmatprep.subr.mxu0 0.0
  %202 = vmatpush1.msra.mxu0 0.0
  %203 = vmatprep.subr.mxu0 0.0
  %204 = vmatpush1.msra.mxu0 0.0
  %205 = vmatprep.subr.mxu0 0.0
  %206 = vmatpush1.msra.mxu0 0.0
  %207 = vmatprep.subr.mxu0 0.0
  %208 = vmatpush1.msra.mxu0 0.0
  %209 = vmatprep.subr.mxu0 0.0
  %210 = vmatpush1.msra.mxu0 0.0
  %211 = vmatprep.subr.mxu0 0.0
  %212 = vmatpush1.msra.mxu0 0.0
  %213 = vmatprep.subr.mxu0 0.0
  %214 = vmatpush1.msra.mxu0 0.0
  %215 = vmatprep.subr.mxu0 0.0
  %216 = vmatpush1.msra.mxu0 0.0
  %217 = vmatprep.subr.mxu0 0.0
  %218 = vmatpush1.msra.mxu0 0.0
  %219 = vmatprep.subr.mxu0 0.0
  %220 = vmatpush1.msra.mxu0 0.0
  %221 = vmatprep.subr.mxu0 0.0
  %222 = vmatpush1.msra.mxu0 %v11
  %223 = vmatprep.subr.mxu0 0.0
  %224 = vmatpush2.msra.mxu0 0.0
  %225 = vmatprep.subr.mxu0 0.0
  %226 = vmatpush2.msra.mxu0 0.0
  %227 = vmatprep.subr.mxu0 0.0
  %228 = vmatpush2.msra.mxu0 0.0
  %229 = vmatprep.subr.mxu0 0.0
  %230 = vmatpush2.msra.mxu0 0.0
  %231 = vmatprep.subr.mxu0 0.0
  %232 = vmatpush2.msra.mxu0 0.0
  %233 = vmatprep.subr.mxu0 0.0
  %234 = vmatpush2.msra.mxu0 0.0
  %235 = vmatprep.subr.mxu0 0.0
  %236 = vmatpush2.msra.mxu0 0.0
  %237 = vmatprep.subr.mxu0 0.0
  %238 = vmatpush2.msra.mxu0 0.0
  %239 = vmatprep.subr.mxu0 0.0
  %240 = vmatpush2.msra.mxu0 0.0
  %241 = vmatprep.subr.mxu0 0.0
  %242 = vmatpush2.msra.mxu0 0.0
  %243 = vmatprep.subr.mxu0 0.0
  %244 = vmatpush2.msra.mxu0 0.0
  %245 = vmatprep.subr.mxu0 0.0
  %246 = vmatpush2.msra.mxu0 0.0
  %247 = vmatprep.subr.mxu0 0.0
  %248 = vmatpush2.msra.mxu0 0.0
  %249 = vmatprep.subr.mxu0 0.0
  %250 = vmatpush2.msra.mxu0 0.0
  %251 = vmatprep.subr.mxu0 0.0
  %252 = vmatpush2.msra.mxu0 0.0
  %253 = vmatprep.subr.mxu0 0.0
  %254 = vmatpush2.msra.mxu0 0.0
  %255 = vmatprep.mubr.f32.mxu0 0.0
  %256 = vmatmul.mubr.f32.gmra.mxu0 %v189
  %v257 = vpop.f32.mrf.mxu0
  %v258 = vadd.f32 0.0, %v257
  %v259 = vpop.f32.mrf.mxu0
  %260 = vdwg.mxu0
  %v262 = vcombine.high %v258, %v258
  %v264 = vunpack.c.l.s4 1966171168
  %v265 = vunpack.c.0.s8 %v264
  %v266 = vlaneseq
  %v267 = vshrl.u32 %v266, 7
  %v268 = vsub.s32 %v265, %v267
  %v269 = vrot.slane %v258, %v268
  %v271 = vunpack.c.l.s4 1966171168
  %v272 = vunpack.c.0.s8 %v271
  %v273 = vlaneseq
  %v274 = vshrl.u32 %v273, 7
  %v275 = vsub.s32 %v272, %v274
  %v276 = vrot.slane %v262, %v275
  %v277 = vcombine.high %v269, %v269
  %v278 = vcombine.high %v276, %v276
  %v280 = vunpack.c.l.s4 1966171168
  %v281 = vunpack.c.0.s8 %v280
  %v282 = vlaneseq
  %v283 = vshrl.u32 %v282, 7
  %v284 = vsub.s32 %v281, %v283
  %v285 = vrot.slane %v269, %v284
  %v287 = vunpack.c.l.s4 1966171168
  %v288 = vunpack.c.0.s8 %v287
  %v289 = vlaneseq
  %v290 = vshrl.u32 %v289, 7
  %v291 = vsub.s32 %v288, %v290
  %v292 = vrot.slane %v276, %v291
  %v294 = vunpack.c.l.s4 1966171168
  %v295 = vunpack.c.0.s8 %v294
  %v296 = vlaneseq
  %v297 = vshrl.u32 %v296, 7
  %v298 = vsub.s32 %v295, %v297
  %v299 = vrot.slane %v277, %v298
  %v301 = vunpack.c.l.s4 1966171168
  %v302 = vunpack.c.0.s8 %v301
  %v303 = vlaneseq
  %v304 = vshrl.u32 %v303, 7
  %v305 = vsub.s32 %v302, %v304
  %v306 = vrot.slane %v278, %v305
  %v307 = vcombine.high %v285, %v285
  %v308 = vcombine.high %v292, %v292
  %v309 = vcombine.high %v299, %v299
  %v310 = vcombine.high %v306, %v306
  %v311 = vlaneseq
  %v312 = vshrl.u32 %v311, 7
  %v313 = vsub.s32 0, %v312
  %v314 = vrot.slane %v285, %v313
  %v315 = vlaneseq
  %v316 = vshrl.u32 %v315, 7
  %v317 = vsub.s32 0, %v316
  %v318 = vrot.slane %v299, %v317
  %v319 = vlaneseq
  %v320 = vshrl.u32 %v319, 7
  %v321 = vsub.s32 0, %v320
  %v322 = vrot.slane %v307, %v321
  %v323 = vlaneseq
  %v324 = vshrl.u32 %v323, 7
  %v325 = vsub.s32 0, %v324
  %v326 = vrot.slane %v309, %v325
  %v327 = vlaneseq
  %v328 = vshrl.u32 %v327, 7
  %v329 = vsub.s32 0, %v328
  %v330 = vrot.slane %v292, %v329
  %v331 = vlaneseq
  %v332 = vshrl.u32 %v331, 7
  %v333 = vsub.s32 0, %v332
  %v334 = vrot.slane %v306, %v333
  %v335 = vlaneseq
  %v336 = vshrl.u32 %v335, 7
  %v337 = vsub.s32 0, %v336
  %v338 = vrot.slane %v308, %v337
  %v339 = vlaneseq
  %v340 = vshrl.u32 %v339, 7
  %v341 = vsub.s32 0, %v340
  %v342 = vrot.slane %v310, %v341
  %351 = vrot.lane.b32.xlu0 %v258, 112
  %v352 = vpop.permute.xlu0 %351
  %353 = vrot.lane.b32.xlu0 %v262, 112
  %v354 = vpop.permute.xlu0 %353
  %v357 = vadd.f32 %v314, %v352
  %v358 = vadd.f32 %v318, %v352
  %v359 = vadd.f32 %v322, %v352
  %v360 = vadd.f32 %v326, %v352
  %v361 = vadd.f32 %v330, %v354
  %v362 = vadd.f32 %v334, %v354
  %v363 = vadd.f32 %v338, %v354
  %v364 = vadd.f32 %v342, %v354
  %v365 = vlaneseq
  %v366 = vshrl.u32 %v365, 7
  %v367 = vsub.s32 0, %v366
  %v368 = vrot.slane %v18, %v367
  %v369 = vadd.f32 %v357, %v368
  %v370 = vadd.f32 %v358, %v368
  %v371 = vadd.f32 %v359, %v368
  %v372 = vadd.f32 %v360, %v368
  %v373 = vadd.f32 %v361, %v368
  %v374 = vadd.f32 %v362, %v368
  %v375 = vadd.f32 %v363, %v368
  %v376 = vadd.f32 %v364, %v368
  %vm377 = vcmp.gt.f32.partialorder %v369, 0.0
  %vm378 = vcmp.gt.f32.partialorder %v370, 0.0
  %vm379 = vcmp.gt.f32.partialorder %v371, 0.0
  %vm380 = vcmp.gt.f32.partialorder %v372, 0.0
  %vm381 = vcmp.gt.f32.partialorder %v373, 0.0
  %vm382 = vcmp.gt.f32.partialorder %v374, 0.0
  %vm383 = vcmp.gt.f32.partialorder %v375, 0.0
  %vm384 = vcmp.gt.f32.partialorder %v376, 0.0
  %v385 = vmul.f32 %v369, 0.2
  %v386 = vmul.f32 %v370, 0.2
  %v387 = vmul.f32 %v371, 0.2
  %v388 = vmul.f32 %v372, 0.2
  %v389 = vmul.f32 %v373, 0.2
  %v390 = vmul.f32 %v374, 0.2
  %v391 = vmul.f32 %v375, 0.2
  %v392 = vmul.f32 %v376, 0.2
  %v393 = vsel %vm377, %v369, %v385
  %v394 = vsel %vm378, %v370, %v386
  %v395 = vsel %vm379, %v371, %v387
  %v396 = vsel %vm380, %v372, %v388
  %v397 = vsel %vm381, %v373, %v389
  %v398 = vsel %vm382, %v374, %v390
  %v399 = vsel %vm383, %v375, %v391
  %v400 = vsel %vm384, %v376, %v392
  %v401 = vlaneseq
  %v402 = vshrl.u32 %v401, 7
  %v403 = vsub.s32 0, %v402
  %v404 = vrot.slane %v19, %v403
  %v405 = vmul.f32 %v393, %v404
  %v406 = vmul.f32 %v394, %v404
  %v407 = vmul.f32 %v395, %v404
  %v408 = vmul.f32 %v396, %v404
  %v409 = vmul.f32 %v397, %v404
  %v410 = vmul.f32 %v398, %v404
  %v411 = vmul.f32 %v399, %v404
  %v412 = vmul.f32 %v400, %v404
  %vm413 = vcmask 125952
  %v414 = vsel %vm413, %v405, 0.0
  %415 = vadd.xlane.f32.xlu0 %v414
  %v416 = vpop.xlane.xlu0 %415
  %v417 = vsel %vm413, %v406, 0.0
  %418 = vadd.xlane.f32.xlu0 %v417
  %v419 = vpop.xlane.xlu0 %418
  %v420 = vsel %vm413, %v407, 0.0
  %421 = vadd.xlane.f32.xlu0 %v420
  %v422 = vpop.xlane.xlu0 %421
  %v423 = vsel %vm413, %v408, 0.0
  %424 = vadd.xlane.f32.xlu0 %v423
  %v425 = vpop.xlane.xlu0 %424
  %v426 = vsel %vm413, %v409, 0.0
  %427 = vadd.xlane.f32.xlu0 %v426
  %v428 = vpop.xlane.xlu0 %427
  %v429 = vsel %vm413, %v410, 0.0
  %430 = vadd.xlane.f32.xlu0 %v429
  %v431 = vpop.xlane.xlu0 %430
  %v432 = vsel %vm413, %v411, 0.0
  %433 = vadd.xlane.f32.xlu0 %v432
  %v434 = vpop.xlane.xlu0 %433
  %v435 = vsel %vm413, %v412, 0.0
  %436 = vadd.xlane.f32.xlu0 %v435
  %v437 = vpop.xlane.xlu0 %436
  %v439 = vlaneseq
  %v440 = vshrl.u32 %v439, 7
  %v441 = vsub.s32 0, %v440
  %v442 = vrot.slane %v17, %v441
  %444 = vbcast.lane.b32.xlu0 %v442, 256
  %v445 = vpop.permute.xlu0 %444
  %v446 = vlaneseq
  %v447 = vshrl.u32 %v446, 7
  %v448 = vsub.s32 1, %v447
  %v449 = vrot.slane %v17, %v448
  %451 = vbcast.lane.b32.xlu0 %v449, 256
  %v452 = vpop.permute.xlu0 %451
  %v453 = vlaneseq
  %v454 = vshrl.u32 %v453, 7
  %v455 = vsub.s32 2, %v454
  %v456 = vrot.slane %v17, %v455
  %458 = vbcast.lane.b32.xlu0 %v456, 256
  %v459 = vpop.permute.xlu0 %458
  %v460 = vlaneseq
  %v461 = vshrl.u32 %v460, 7
  %v462 = vsub.s32 3, %v461
  %v463 = vrot.slane %v17, %v462
  %465 = vbcast.lane.b32.xlu0 %v463, 256
  %v466 = vpop.permute.xlu0 %465
  %v471 = vadd.f32 %v416, %v445
  %v472 = vadd.f32 %v419, %v452
  %v473 = vadd.f32 %v422, %v459
  %v474 = vadd.f32 %v425, %v466
  %v475 = vadd.f32 %v428, %v445
  %v476 = vadd.f32 %v431, %v452
  %v477 = vadd.f32 %v434, %v459
  %v478 = vadd.f32 %v437, %v466
  %487 = vset.pattern.permute.xlu0 0
  %488 = vperm.xlu0 %487, %v471
  %v489 = vpop.permute.xlu0 %488
  %490 = vset.pattern.permute.xlu0 0
  %491 = vperm.xlu0 %490, %v472
  %v492 = vpop.permute.xlu0 %491
  %493 = vset.pattern.permute.xlu0 0
  %494 = vperm.xlu0 %493, %v473
  %v495 = vpop.permute.xlu0 %494
  %496 = vset.pattern.permute.xlu0 0
  %497 = vperm.xlu0 %496, %v474
  %v498 = vpop.permute.xlu0 %497
  %499 = vset.pattern.permute.xlu0 0
  %500 = vperm.xlu0 %499, %v475
  %v501 = vpop.permute.xlu0 %500
  %502 = vset.pattern.permute.xlu0 0
  %503 = vperm.xlu0 %502, %v476
  %v504 = vpop.permute.xlu0 %503
  %505 = vset.pattern.permute.xlu0 0
  %506 = vperm.xlu0 %505, %v477
  %v507 = vpop.permute.xlu0 %506
  %508 = vset.pattern.permute.xlu0 0
  %509 = vperm.xlu0 %508, %v478
  %v510 = vpop.permute.xlu0 %509
  %v511 = vlaneseq
  %v512 = vshrl.u32 %v511, 7
  %v513 = vsub.s32 %v31, %v512
  %v514 = vrot.slane %v489, %v513
  %v515 = vlaneseq
  %v516 = vshrl.u32 %v515, 7
  %v517 = vsub.s32 %v31, %v516
  %v518 = vrot.slane %v492, %v517
  %v519 = vlaneseq
  %v520 = vshrl.u32 %v519, 7
  %v521 = vsub.s32 %v31, %v520
  %v522 = vrot.slane %v495, %v521
  %v523 = vlaneseq
  %v524 = vshrl.u32 %v523, 7
  %v525 = vsub.s32 %v31, %v524
  %v526 = vrot.slane %v498, %v525
  %v527 = vlaneseq
  %v528 = vshrl.u32 %v527, 7
  %v529 = vsub.s32 %v31, %v528
  %v530 = vrot.slane %v501, %v529
  %v531 = vlaneseq
  %v532 = vshrl.u32 %v531, 7
  %v533 = vsub.s32 %v31, %v532
  %v534 = vrot.slane %v504, %v533
  %v535 = vlaneseq
  %v536 = vshrl.u32 %v535, 7
  %v537 = vsub.s32 %v31, %v536
  %v538 = vrot.slane %v507, %v537
  %v539 = vlaneseq
  %v540 = vshrl.u32 %v539, 7
  %v541 = vsub.s32 %v31, %v540
  %v542 = vrot.slane %v510, %v541
  %vm543 = vcmask 1041409
  %v544 = vsel %vm543, %v518, %v514
  %vm545 = vcmask 1042434
  %v546 = vsel %vm545, %v522, %v544
  %vm547 = vcmask 1043459
  %v548 = vsel %vm547, %v526, %v546
  %v549 = vsel %vm543, %v534, %v530
  %v550 = vsel %vm545, %v538, %v549
  %v551 = vsel %vm547, %v542, %v550
  %vm554 = vcmask 27648
  %v555 = vsel %vm554, %v548, -inf
  %556 = vmax.xlane.f32.xlu0 %v555
  %v557 = vpop.xlane.xlu0 %556
  %v558 = vsel %vm554, %v551, -inf
  %559 = vmax.xlane.f32.xlu0 %v558
  %v560 = vpop.xlane.xlu0 %559
  %v563 = vlaneseq
  %v564 = vshrl.u32 %v563, 7
  %v565 = vsub.s32 0, %v564
  %v566 = vrot.slane %v557, %v565
  %v567 = vlaneseq
  %v568 = vshrl.u32 %v567, 7
  %v569 = vsub.s32 1, %v568
  %v570 = vrot.slane %v557, %v569
  %v571 = vlaneseq
  %v572 = vshrl.u32 %v571, 7
  %v573 = vsub.s32 2, %v572
  %v574 = vrot.slane %v557, %v573
  %v575 = vlaneseq
  %v576 = vshrl.u32 %v575, 7
  %v577 = vsub.s32 3, %v576
  %v578 = vrot.slane %v557, %v577
  %v579 = vlaneseq
  %v580 = vshrl.u32 %v579, 7
  %v581 = vsub.s32 0, %v580
  %v582 = vrot.slane %v560, %v581
  %v583 = vlaneseq
  %v584 = vshrl.u32 %v583, 7
  %v585 = vsub.s32 1, %v584
  %v586 = vrot.slane %v560, %v585
  %v587 = vlaneseq
  %v588 = vshrl.u32 %v587, 7
  %v589 = vsub.s32 2, %v588
  %v590 = vrot.slane %v560, %v589
  %v591 = vlaneseq
  %v592 = vshrl.u32 %v591, 7
  %v593 = vsub.s32 3, %v592
  %v594 = vrot.slane %v560, %v593
  %v603 = vsub.f32 %v471, %v566
  %v604 = vsub.f32 %v472, %v570
  %v605 = vsub.f32 %v473, %v574
  %v606 = vsub.f32 %v474, %v578
  %v607 = vsub.f32 %v475, %v582
  %v608 = vsub.f32 %v476, %v586
  %v609 = vsub.f32 %v477, %v590
  %v610 = vsub.f32 %v478, %v594
  %v611 = vmul.f32 %v603, 1.442695
  %v612 = vpow.pop %v611
  %v613 = vmul.f32 %v604, 1.442695
  %v614 = vpow.pop %v613
  %v615 = vmul.f32 %v605, 1.442695
  %v616 = vpow.pop %v615
  %v617 = vmul.f32 %v606, 1.442695
  %v618 = vpow.pop %v617
  %v619 = vmul.f32 %v607, 1.442695
  %v620 = vpow.pop %v619
  %v621 = vmul.f32 %v608, 1.442695
  %v622 = vpow.pop %v621
  %v623 = vmul.f32 %v609, 1.442695
  %v624 = vpow.pop %v623
  %v625 = vmul.f32 %v610, 1.442695
  %v626 = vpow.pop %v625
  %635 = vset.pattern.permute.xlu0 0
  %636 = vperm.xlu0 %635, %v612
  %v637 = vpop.permute.xlu0 %636
  %638 = vset.pattern.permute.xlu0 0
  %639 = vperm.xlu0 %638, %v614
  %v640 = vpop.permute.xlu0 %639
  %641 = vset.pattern.permute.xlu0 0
  %642 = vperm.xlu0 %641, %v616
  %v643 = vpop.permute.xlu0 %642
  %644 = vset.pattern.permute.xlu0 0
  %645 = vperm.xlu0 %644, %v618
  %v646 = vpop.permute.xlu0 %645
  %647 = vset.pattern.permute.xlu0 0
  %648 = vperm.xlu0 %647, %v620
  %v649 = vpop.permute.xlu0 %648
  %650 = vset.pattern.permute.xlu0 0
  %651 = vperm.xlu0 %650, %v622
  %v652 = vpop.permute.xlu0 %651
  %653 = vset.pattern.permute.xlu0 0
  %654 = vperm.xlu0 %653, %v624
  %v655 = vpop.permute.xlu0 %654
  %656 = vset.pattern.permute.xlu0 0
  %657 = vperm.xlu0 %656, %v626
  %v658 = vpop.permute.xlu0 %657
  %v659 = vlaneseq
  %v660 = vshrl.u32 %v659, 7
  %v661 = vsub.s32 %v31, %v660
  %v662 = vrot.slane %v637, %v661
  %v663 = vlaneseq
  %v664 = vshrl.u32 %v663, 7
  %v665 = vsub.s32 %v31, %v664
  %v666 = vrot.slane %v640, %v665
  %v667 = vlaneseq
  %v668 = vshrl.u32 %v667, 7
  %v669 = vsub.s32 %v31, %v668
  %v670 = vrot.slane %v643, %v669
  %v671 = vlaneseq
  %v672 = vshrl.u32 %v671, 7
  %v673 = vsub.s32 %v31, %v672
  %v674 = vrot.slane %v646, %v673
  %v675 = vlaneseq
  %v676 = vshrl.u32 %v675, 7
  %v677 = vsub.s32 %v31, %v676
  %v678 = vrot.slane %v649, %v677
  %v679 = vlaneseq
  %v680 = vshrl.u32 %v679, 7
  %v681 = vsub.s32 %v31, %v680
  %v682 = vrot.slane %v652, %v681
  %v683 = vlaneseq
  %v684 = vshrl.u32 %v683, 7
  %v685 = vsub.s32 %v31, %v684
  %v686 = vrot.slane %v655, %v685
  %v687 = vlaneseq
  %v688 = vshrl.u32 %v687, 7
  %v689 = vsub.s32 %v31, %v688
  %v690 = vrot.slane %v658, %v689
  %v691 = vsel %vm543, %v666, %v662
  %v692 = vsel %vm545, %v670, %v691
  %v693 = vsel %vm547, %v674, %v692
  %v694 = vsel %vm543, %v682, %v678
  %v695 = vsel %vm545, %v686, %v694
  %v696 = vsel %vm547, %v690, %v695
  %v699 = vsel %vm554, %v693, 0.0
  %700 = vadd.xlane.f32.xlu0 %v699
  %v701 = vpop.xlane.xlu0 %700
  %v702 = vsel %vm554, %v696, 0.0
  %703 = vadd.xlane.f32.xlu0 %v702
  %v704 = vpop.xlane.xlu0 %703
  %v707 = vlaneseq
  %v708 = vshrl.u32 %v707, 7
  %v709 = vsub.s32 0, %v708
  %v710 = vrot.slane %v701, %v709
  %v711 = vlaneseq
  %v712 = vshrl.u32 %v711, 7
  %v713 = vsub.s32 1, %v712
  %v714 = vrot.slane %v701, %v713
  %v715 = vlaneseq
  %v716 = vshrl.u32 %v715, 7
  %v717 = vsub.s32 2, %v716
  %v718 = vrot.slane %v701, %v717
  %v719 = vlaneseq
  %v720 = vshrl.u32 %v719, 7
  %v721 = vsub.s32 3, %v720
  %v722 = vrot.slane %v701, %v721
  %v723 = vlaneseq
  %v724 = vshrl.u32 %v723, 7
  %v725 = vsub.s32 0, %v724
  %v726 = vrot.slane %v704, %v725
  %v727 = vlaneseq
  %v728 = vshrl.u32 %v727, 7
  %v729 = vsub.s32 1, %v728
  %v730 = vrot.slane %v704, %v729
  %v731 = vlaneseq
  %v732 = vshrl.u32 %v731, 7
  %v733 = vsub.s32 2, %v732
  %v734 = vrot.slane %v704, %v733
  %v735 = vlaneseq
  %v736 = vshrl.u32 %v735, 7
  %v737 = vsub.s32 3, %v736
  %v738 = vrot.slane %v704, %v737
  %v747 = vrcp.pop %v710
  %v748 = vmul.f32 %v612, %v747
  %v749 = vrcp.pop %v714
  %v750 = vmul.f32 %v614, %v749
  %v751 = vrcp.pop %v718
  %v752 = vmul.f32 %v616, %v751
  %v753 = vrcp.pop %v722
  %v754 = vmul.f32 %v618, %v753
  %v755 = vrcp.pop %v726
  %v756 = vmul.f32 %v620, %v755
  %v757 = vrcp.pop %v730
  %v758 = vmul.f32 %v622, %v757
  %v759 = vrcp.pop %v734
  %v760 = vmul.f32 %v624, %v759
  %v761 = vrcp.pop %v738
  %v762 = vmul.f32 %v626, %v761
  %767 = vset.pattern.permute.xlu0 0
  %768 = vperm.xlu0 %767, %v748
  %v769 = vpop.permute.xlu0 %768
  %770 = vset.pattern.permute.xlu0 0
  %771 = vperm.xlu0 %770, %v750
  %v772 = vpop.permute.xlu0 %771
  %773 = vset.pattern.permute.xlu0 0
  %774 = vperm.xlu0 %773, %v752
  %v775 = vpop.permute.xlu0 %774
  %776 = vset.pattern.permute.xlu0 0
  %777 = vperm.xlu0 %776, %v754
  %v778 = vpop.permute.xlu0 %777
  %v779 = vlaneseq
  %v780 = vshrl.u32 %v779, 7
  %v781 = vsub.s32 %v31, %v780
  %v782 = vrot.slane %v769, %v781
  %v783 = vlaneseq
  %v784 = vshrl.u32 %v783, 7
  %v785 = vsub.s32 %v31, %v784
  %v786 = vrot.slane %v772, %v785
  %v787 = vlaneseq
  %v788 = vshrl.u32 %v787, 7
  %v789 = vsub.s32 %v31, %v788
  %v790 = vrot.slane %v775, %v789
  %v791 = vlaneseq
  %v792 = vshrl.u32 %v791, 7
  %v793 = vsub.s32 %v31, %v792
  %v794 = vrot.slane %v778, %v793
  %v795 = vsel %vm543, %v786, %v782
  %v796 = vsel %vm545, %v790, %v795
  %v797 = vsel %vm547, %v794, %v796
  %v798 = vsel %vm35, %v797, 0
  %800 = vmatprep.subr.mxu0 0.0
  %801 = vmatpush1.xpose.msra.mxu0 0.0
  %802 = vmatprep.subr.mxu0 0.0
  %803 = vmatpush1.xpose.msra.mxu0 0.0
  %804 = vmatprep.subr.mxu0 0.0
  %805 = vmatpush1.xpose.msra.mxu0 0.0
  %806 = vmatprep.subr.mxu0 0.0
  %807 = vmatpush1.xpose.msra.mxu0 0.0
  %808 = vmatprep.subr.mxu0 0.0
  %809 = vmatpush1.xpose.msra.mxu0 0.0
  %810 = vmatprep.subr.mxu0 0.0
  %811 = vmatpush1.xpose.msra.mxu0 0.0
  %812 = vmatprep.subr.mxu0 0.0
  %813 = vmatpush1.xpose.msra.mxu0 0.0
  %814 = vmatprep.subr.mxu0 0.0
  %815 = vmatpush1.xpose.msra.mxu0 0.0
  %816 = vmatprep.subr.mxu0 0.0
  %817 = vmatpush1.xpose.msra.mxu0 0.0
  %818 = vmatprep.subr.mxu0 0.0
  %819 = vmatpush1.xpose.msra.mxu0 0.0
  %820 = vmatprep.subr.mxu0 0.0
  %821 = vmatpush1.xpose.msra.mxu0 0.0
  %822 = vmatprep.subr.mxu0 0.0
  %823 = vmatpush1.xpose.msra.mxu0 0.0
  %824 = vmatprep.subr.mxu0 0.0
  %825 = vmatpush1.xpose.msra.mxu0 0.0
  %826 = vmatprep.subr.mxu0 0.0
  %827 = vmatpush1.xpose.msra.mxu0 0.0
  %828 = vmatprep.subr.mxu0 0.0
  %829 = vmatpush1.xpose.msra.mxu0 0.0
  %830 = vmatprep.subr.mxu0 0.0
  %831 = vmatpush1.xpose.msra.mxu0 %v798
  %832 = vmatprep.subr.mxu0 0.0
  %833 = vmatpush2.xpose.msra.mxu0 0.0
  %834 = vmatprep.subr.mxu0 0.0
  %835 = vmatpush2.xpose.msra.mxu0 0.0
  %836 = vmatprep.subr.mxu0 0.0
  %837 = vmatpush2.xpose.msra.mxu0 0.0
  %838 = vmatprep.subr.mxu0 0.0
  %839 = vmatpush2.xpose.msra.mxu0 0.0
  %840 = vmatprep.subr.mxu0 0.0
  %841 = vmatpush2.xpose.msra.mxu0 0.0
  %842 = vmatprep.subr.mxu0 0.0
  %843 = vmatpush2.xpose.msra.mxu0 0.0
  %844 = vmatprep.subr.mxu0 0.0
  %845 = vmatpush2.xpose.msra.mxu0 0.0
  %846 = vmatprep.subr.mxu0 0.0
  %847 = vmatpush2.xpose.msra.mxu0 0.0
  %848 = vmatprep.subr.mxu0 0.0
  %849 = vmatpush2.xpose.msra.mxu0 0.0
  %850 = vmatprep.subr.mxu0 0.0
  %851 = vmatpush2.xpose.msra.mxu0 0.0
  %852 = vmatprep.subr.mxu0 0.0
  %853 = vmatpush2.xpose.msra.mxu0 0.0
  %854 = vmatprep.subr.mxu0 0.0
  %855 = vmatpush2.xpose.msra.mxu0 0.0
  %856 = vmatprep.subr.mxu0 0.0
  %857 = vmatpush2.xpose.msra.mxu0 0.0
  %858 = vmatprep.subr.mxu0 0.0
  %859 = vmatpush2.xpose.msra.mxu0 0.0
  %860 = vmatprep.subr.mxu0 0.0
  %861 = vmatpush2.xpose.msra.mxu0 0.0
  %862 = vmatprep.subr.mxu0 0.0
  %863 = vmatpush2.xpose.msra.mxu0 0.0
  %864 = vmatprep.mubr.f32.mxu0 0.0
  %865 = vmatmul.mubr.f32.gmra.mxu0 %v40
  %v866 = vpop.f32.mrf.mxu0
  %v867 = vadd.f32 0.0, %v866
  %v868 = vpop.f32.mrf.mxu0
  %869 = vdwg.mxu0
  %874 = vset.pattern.permute.xlu0 0
  %875 = vperm.xlu0 %874, %v756
  %v876 = vpop.permute.xlu0 %875
  %877 = vset.pattern.permute.xlu0 0
  %878 = vperm.xlu0 %877, %v758
  %v879 = vpop.permute.xlu0 %878
  %880 = vset.pattern.permute.xlu0 0
  %881 = vperm.xlu0 %880, %v760
  %v882 = vpop.permute.xlu0 %881
  %883 = vset.pattern.permute.xlu0 0
  %884 = vperm.xlu0 %883, %v762
  %v885 = vpop.permute.xlu0 %884
  %v886 = vlaneseq
  %v887 = vshrl.u32 %v886, 7
  %v888 = vsub.s32 %v31, %v887
  %v889 = vrot.slane %v876, %v888
  %v890 = vlaneseq
  %v891 = vshrl.u32 %v890, 7
  %v892 = vsub.s32 %v31, %v891
  %v893 = vrot.slane %v879, %v892
  %v894 = vlaneseq
  %v895 = vshrl.u32 %v894, 7
  %v896 = vsub.s32 %v31, %v895
  %v897 = vrot.slane %v882, %v896
  %v898 = vlaneseq
  %v899 = vshrl.u32 %v898, 7
  %v900 = vsub.s32 %v31, %v899
  %v901 = vrot.slane %v885, %v900
  %v902 = vsel %vm543, %v893, %v889
  %v903 = vsel %vm545, %v897, %v902
  %v904 = vsel %vm547, %v901, %v903
  %v905 = vsel %vm35, %v904, 0
  %907 = vmatprep.subr.mxu0 0.0
  %908 = vmatpush1.xpose.msra.mxu0 0.0
  %909 = vmatprep.subr.mxu0 0.0
  %910 = vmatpush1.xpose.msra.mxu0 0.0
  %911 = vmatprep.subr.mxu0 0.0
  %912 = vmatpush1.xpose.msra.mxu0 0.0
  %913 = vmatprep.subr.mxu0 0.0
  %914 = vmatpush1.xpose.msra.mxu0 0.0
  %915 = vmatprep.subr.mxu0 0.0
  %916 = vmatpush1.xpose.msra.mxu0 0.0
  %917 = vmatprep.subr.mxu0 0.0
  %918 = vmatpush1.xpose.msra.mxu0 0.0
  %919 = vmatprep.subr.mxu0 0.0
  %920 = vmatpush1.xpose.msra.mxu0 0.0
  %921 = vmatprep.subr.mxu0 0.0
  %922 = vmatpush1.xpose.msra.mxu0 0.0
  %923 = vmatprep.subr.mxu0 0.0
  %924 = vmatpush1.xpose.msra.mxu0 0.0
  %925 = vmatprep.subr.mxu0 0.0
  %926 = vmatpush1.xpose.msra.mxu0 0.0
  %927 = vmatprep.subr.mxu0 0.0
  %928 = vmatpush1.xpose.msra.mxu0 0.0
  %929 = vmatprep.subr.mxu0 0.0
  %930 = vmatpush1.xpose.msra.mxu0 0.0
  %931 = vmatprep.subr.mxu0 0.0
  %932 = vmatpush1.xpose.msra.mxu0 0.0
  %933 = vmatprep.subr.mxu0 0.0
  %934 = vmatpush1.xpose.msra.mxu0 0.0
  %935 = vmatprep.subr.mxu0 0.0
  %936 = vmatpush1.xpose.msra.mxu0 0.0
  %937 = vmatprep.subr.mxu0 0.0
  %938 = vmatpush1.xpose.msra.mxu0 %v905
  %939 = vmatprep.subr.mxu0 0.0
  %940 = vmatpush2.xpose.msra.mxu0 0.0
  %941 = vmatprep.subr.mxu0 0.0
  %942 = vmatpush2.xpose.msra.mxu0 0.0
  %943 = vmatprep.subr.mxu0 0.0
  %944 = vmatpush2.xpose.msra.mxu0 0.0
  %945 = vmatprep.subr.mxu0 0.0
  %946 = vmatpush2.xpose.msra.mxu0 0.0
  %947 = vmatprep.subr.mxu0 0.0
  %948 = vmatpush2.xpose.msra.mxu0 0.0
  %949 = vmatprep.subr.mxu0 0.0
  %950 = vmatpush2.xpose.msra.mxu0 0.0
  %951 = vmatprep.subr.mxu0 0.0
  %952 = vmatpush2.xpose.msra.mxu0 0.0
  %953 = vmatprep.subr.mxu0 0.0
  %954 = vmatpush2.xpose.msra.mxu0 0.0
  %955 = vmatprep.subr.mxu0 0.0
  %956 = vmatpush2.xpose.msra.mxu0 0.0
  %957 = vmatprep.subr.mxu0 0.0
  %958 = vmatpush2.xpose.msra.mxu0 0.0
  %959 = vmatprep.subr.mxu0 0.0
  %960 = vmatpush2.xpose.msra.mxu0 0.0
  %961 = vmatprep.subr.mxu0 0.0
  %962 = vmatpush2.xpose.msra.mxu0 0.0
  %963 = vmatprep.subr.mxu0 0.0
  %964 = vmatpush2.xpose.msra.mxu0 0.0
  %965 = vmatprep.subr.mxu0 0.0
  %966 = vmatpush2.xpose.msra.mxu0 0.0
  %967 = vmatprep.subr.mxu0 0.0
  %968 = vmatpush2.xpose.msra.mxu0 0.0
  %969 = vmatprep.subr.mxu0 0.0
  %970 = vmatpush2.xpose.msra.mxu0 0.0
  %971 = vmatprep.mubr.f32.mxu0 0.0
  %972 = vmatmul.mubr.f32.gmra.mxu0 %v113
  %v973 = vpop.f32.mrf.mxu0
  %v974 = vadd.f32 0.0, %v973
  %v975 = vpop.f32.mrf.mxu0
  %976 = vdwg.mxu0
  %v977 = vxor.u32 %v867, 2147483648
  %v978 = vxor.u32 %v974, 2147483648
  %v979 = vmul.f32 %v977, 1.442695
  %v980 = vpow.pop %v979
  %v981 = vmul.f32 %v978, 1.442695
  %v982 = vpow.pop %v981
  %v983 = vadd.f32 %v980, 1.0
  %v984 = vadd.f32 %v982, 1.0
  %v985 = vrcp.pop %v983
  %v986 = vmul.f32 1.0, %v985
  %v987 = vrcp.pop %v984
  %v988 = vmul.f32 1.0, %v987
  %v989 = vadd.f32 %v986, %v26
  %v990 = vadd.f32 %v988, %v27
  %v991 = vsel %vm35, %v989, 0.0
  %992 = vadd.xlane.f32.xlu0 %v991
  %v993 = vpop.xlane.xlu0 %992
  %v994 = vsel %vm35, %v990, 0.0
  %995 = vadd.xlane.f32.xlu0 %v994
  %v996 = vpop.xlane.xlu0 %995
  %v997 = vrcp.pop 4.0
  %v998 = vmul.f32 %v993, %v997
  %v999 = vmul.f32 %v996, %v997
  %v1000 = vsub.f32 %v989, %v998
  %v1001 = vsub.f32 %v990, %v999
  %v1002 = vmul.f32 %v1000, %v1000
  %v1003 = vmul.f32 %v1001, %v1001
  %v1004 = vsel %vm35, %v1002, 0.0
  %1005 = vadd.xlane.f32.xlu0 %v1004
  %v1006 = vpop.xlane.xlu0 %1005
  %v1007 = vsel %vm35, %v1003, 0.0
  %1008 = vadd.xlane.f32.xlu0 %v1007
  %v1009 = vpop.xlane.xlu0 %1008
  %v1010 = vmul.f32 %v1006, %v997
  %v1011 = vmul.f32 %v1009, %v997
  %v1012 = vadd.f32 %v1010, 1e-05
  %v1013 = vadd.f32 %v1011, 1e-05
  %v1014 = vrsqrt.pop %v1012
  %v1015 = vrsqrt.pop %v1013
  %v1016 = vmul.f32 %v1000, %v1014
  %v1017 = vmul.f32 %v1001, %v1015
  %v1018 = vlaneseq
  %v1019 = vshrl.u32 %v1018, 7
  %v1020 = vsub.s32 0, %v1019
  %v1021 = vrot.slane %v20, %v1020
  %v1022 = vmul.f32 %v1016, %v1021
  %v1023 = vmul.f32 %v1017, %v1021
  %v1024 = vlaneseq
  %v1025 = vshrl.u32 %v1024, 7
  %v1026 = vsub.s32 0, %v1025
  %v1027 = vrot.slane %v21, %v1026
  %v1028 = vadd.f32 %v1022, %v1027
  %v1029 = vadd.f32 %v1023, %v1027
  %v1030 = vlaneseq
  %v1031 = vshrl.u32 %v1030, 7
  %v1032 = vsub.s32 0, %v1031
  %v1033 = vrot.slane %v22, %v1032
  %v1035 = vsel %vm35, %v1028, 0
  %v1038 = vsel %vm35, %v1029, 0
  %vm1040 = vcmask 1043456
  %v1042 = vsel %vm1040, %v12, 0
  %1044 = vmatprep.subr.mxu0 0.0
  %1045 = vmatpush1.msra.mxu0 0.0
  %1046 = vmatprep.subr.mxu0 0.0
  %1047 = vmatpush1.msra.mxu0 0.0
  %1048 = vmatprep.subr.mxu0 0.0
  %1049 = vmatpush1.msra.mxu0 0.0
  %1050 = vmatprep.subr.mxu0 0.0
  %1051 = vmatpush1.msra.mxu0 0.0
  %1052 = vmatprep.subr.mxu0 0.0
  %1053 = vmatpush1.msra.mxu0 0.0
  %1054 = vmatprep.subr.mxu0 0.0
  %1055 = vmatpush1.msra.mxu0 0.0
  %1056 = vmatprep.subr.mxu0 0.0
  %1057 = vmatpush1.msra.mxu0 0.0
  %1058 = vmatprep.subr.mxu0 0.0
  %1059 = vmatpush1.msra.mxu0 0.0
  %1060 = vmatprep.subr.mxu0 0.0
  %1061 = vmatpush1.msra.mxu0 0.0
  %1062 = vmatprep.subr.mxu0 0.0
  %1063 = vmatpush1.msra.mxu0 0.0
  %1064 = vmatprep.subr.mxu0 0.0
  %1065 = vmatpush1.msra.mxu0 0.0
  %1066 = vmatprep.subr.mxu0 0.0
  %1067 = vmatpush1.msra.mxu0 0.0
  %1068 = vmatprep.subr.mxu0 0.0
  %1069 = vmatpush1.msra.mxu0 0.0
  %1070 = vmatprep.subr.mxu0 0.0
  %1071 = vmatpush1.msra.mxu0 0.0
  %1072 = vmatprep.subr.mxu0 0.0
  %1073 = vmatpush1.msra.mxu0 0.0
  %1074 = vmatprep.subr.mxu0 0.0
  %1075 = vmatpush1.msra.mxu0 %v1042
  %1076 = vmatprep.subr.mxu0 0.0
  %1077 = vmatpush2.msra.mxu0 0.0
  %1078 = vmatprep.subr.mxu0 0.0
  %1079 = vmatpush2.msra.mxu0 0.0
  %1080 = vmatprep.subr.mxu0 0.0
  %1081 = vmatpush2.msra.mxu0 0.0
  %1082 = vmatprep.subr.mxu0 0.0
  %1083 = vmatpush2.msra.mxu0 0.0
  %1084 = vmatprep.subr.mxu0 0.0
  %1085 = vmatpush2.msra.mxu0 0.0
  %1086 = vmatprep.subr.mxu0 0.0
  %1087 = vmatpush2.msra.mxu0 0.0
  %1088 = vmatprep.subr.mxu0 0.0
  %1089 = vmatpush2.msra.mxu0 0.0
  %1090 = vmatprep.subr.mxu0 0.0
  %1091 = vmatpush2.msra.mxu0 0.0
  %1092 = vmatprep.subr.mxu0 0.0
  %1093 = vmatpush2.msra.mxu0 0.0
  %1094 = vmatprep.subr.mxu0 0.0
  %1095 = vmatpush2.msra.mxu0 0.0
  %1096 = vmatprep.subr.mxu0 0.0
  %1097 = vmatpush2.msra.mxu0 0.0
  %1098 = vmatprep.subr.mxu0 0.0
  %1099 = vmatpush2.msra.mxu0 0.0
  %1100 = vmatprep.subr.mxu0 0.0
  %1101 = vmatpush2.msra.mxu0 0.0
  %1102 = vmatprep.subr.mxu0 0.0
  %1103 = vmatpush2.msra.mxu0 0.0
  %1104 = vmatprep.subr.mxu0 0.0
  %1105 = vmatpush2.msra.mxu0 0.0
  %1106 = vmatprep.subr.mxu0 0.0
  %1107 = vmatpush2.msra.mxu0 0.0
  %1108 = vmatprep.mubr.f32.mxu0 0.0
  %1109 = vmatmul.mubr.f32.gmra.mxu0 %v1035
  %v1110 = vpop.f32.mrf.mxu0
  %v1111 = vadd.f32 %v1033, %v1110
  %v1112 = vpop.f32.mrf.mxu0
  %1113 = vmatprep.mubr.f32.mxu0 0.0
  %1114 = vmatmul.mubr.f32.gmra.mxu0 %v1038
  %v1115 = vpop.f32.mrf.mxu0
  %v1116 = vadd.f32 %v1033, %v1115
  %v1117 = vpop.f32.mrf.mxu0
  %1118 = vdwg.mxu0
  %v1119 = vmax.f32 %v1111, 0.0
  %v1120 = vmax.f32 %v1116, 0.0
  %v1121 = vlaneseq
  %v1122 = vshrl.u32 %v1121, 7
  %v1123 = vsub.s32 0, %v1122
  %v1124 = vrot.slane %v23, %v1123
  %vm1125 = vcmask 261120
  %v1127 = vsel %vm1125, %v1119, 0
  %v1130 = vsel %vm1125, %v1120, 0
  %1132 = vmatprep.subr.mxu0 0.0
  %1133 = vmatpush1.msra.mxu0 0.0
  %1134 = vmatprep.subr.mxu0 0.0
  %1135 = vmatpush1.msra.mxu0 0.0
  %1136 = vmatprep.subr.mxu0 0.0
  %1137 = vmatpush1.msra.mxu0 0.0
  %1138 = vmatprep.subr.mxu0 0.0
  %1139 = vmatpush1.msra.mxu0 0.0
  %1140 = vmatprep.subr.mxu0 0.0
  %1141 = vmatpush1.msra.mxu0 0.0
  %1142 = vmatprep.subr.mxu0 0.0
  %1143 = vmatpush1.msra.mxu0 0.0
  %1144 = vmatprep.subr.mxu0 0.0
  %1145 = vmatpush1.msra.mxu0 0.0
  %1146 = vmatprep.subr.mxu0 0.0
  %1147 = vmatpush1.msra.mxu0 0.0
  %1148 = vmatprep.subr.mxu0 0.0
  %1149 = vmatpush1.msra.mxu0 0.0
  %1150 = vmatprep.subr.mxu0 0.0
  %1151 = vmatpush1.msra.mxu0 0.0
  %1152 = vmatprep.subr.mxu0 0.0
  %1153 = vmatpush1.msra.mxu0 0.0
  %1154 = vmatprep.subr.mxu0 0.0
  %1155 = vmatpush1.msra.mxu0 0.0
  %1156 = vmatprep.subr.mxu0 0.0
  %1157 = vmatpush1.msra.mxu0 %v16
  %1158 = vmatprep.subr.mxu0 0.0
  %1159 = vmatpush1.msra.mxu0 %v15
  %1160 = vmatprep.subr.mxu0 0.0
  %1161 = vmatpush1.msra.mxu0 %v14
  %1162 = vmatprep.subr.mxu0 0.0
  %1163 = vmatpush1.msra.mxu0 %v13
  %1164 = vmatprep.subr.mxu0 0.0
  %1165 = vmatpush2.msra.mxu0 0.0
  %1166 = vmatprep.subr.mxu0 0.0
  %1167 = vmatpush2.msra.mxu0 0.0
  %1168 = vmatprep.subr.mxu0 0.0
  %1169 = vmatpush2.msra.mxu0 0.0
  %1170 = vmatprep.subr.mxu0 0.0
  %1171 = vmatpush2.msra.mxu0 0.0
  %1172 = vmatprep.subr.mxu0 0.0
  %1173 = vmatpush2.msra.mxu0 0.0
  %1174 = vmatprep.subr.mxu0 0.0
  %1175 = vmatpush2.msra.mxu0 0.0
  %1176 = vmatprep.subr.mxu0 0.0
  %1177 = vmatpush2.msra.mxu0 0.0
  %1178 = vmatprep.subr.mxu0 0.0
  %1179 = vmatpush2.msra.mxu0 0.0
  %1180 = vmatprep.subr.mxu0 0.0
  %1181 = vmatpush2.msra.mxu0 0.0
  %1182 = vmatprep.subr.mxu0 0.0
  %1183 = vmatpush2.msra.mxu0 0.0
  %1184 = vmatprep.subr.mxu0 0.0
  %1185 = vmatpush2.msra.mxu0 0.0
  %1186 = vmatprep.subr.mxu0 0.0
  %1187 = vmatpush2.msra.mxu0 0.0
  %1188 = vmatprep.subr.mxu0 0.0
  %1189 = vmatpush2.msra.mxu0 0.0
  %1190 = vmatprep.subr.mxu0 0.0
  %1191 = vmatpush2.msra.mxu0 0.0
  %1192 = vmatprep.subr.mxu0 0.0
  %1193 = vmatpush2.msra.mxu0 0.0
  %1194 = vmatprep.subr.mxu0 0.0
  %1195 = vmatpush2.msra.mxu0 0.0
  %1196 = vmatprep.mubr.f32.mxu0 0.0
  %1197 = vmatmul.mubr.f32.gmra.mxu0 %v1127
  %v1198 = vpop.f32.mrf.mxu0
  %v1199 = vadd.f32 %v1124, %v1198
  %v1200 = vpop.f32.mrf.mxu0
  %1201 = vmatprep.mubr.f32.mxu0 0.0
  %1202 = vmatmul.mubr.f32.gmra.mxu0 %v1130
  %v1203 = vpop.f32.mrf.mxu0
  %v1204 = vadd.f32 %v1124, %v1203
  %v1205 = vpop.f32.mrf.mxu0
  %1206 = vdwg.mxu0
  %v1207 = vadd.f32 %v1199, %v1028
  %v1208 = vadd.f32 %v1204, %v1029
  %v1209 = vsel %vm35, %v1207, 0.0
  %1210 = vadd.xlane.f32.xlu0 %v1209
  %v1211 = vpop.xlane.xlu0 %1210
  %v1212 = vsel %vm35, %v1208, 0.0
  %1213 = vadd.xlane.f32.xlu0 %v1212
  %v1214 = vpop.xlane.xlu0 %1213
  %v1215 = vmul.f32 %v1211, %v997
  %v1216 = vmul.f32 %v1214, %v997
  %v1217 = vsub.f32 %v1207, %v1215
  %v1218 = vsub.f32 %v1208, %v1216
  %v1219 = vmul.f32 %v1217, %v1217
  %v1220 = vmul.f32 %v1218, %v1218
  %v1221 = vsel %vm35, %v1219, 0.0
  %1222 = vadd.xlane.f32.xlu0 %v1221
  %v1223 = vpop.xlane.xlu0 %1222
  %v1224 = vsel %vm35, %v1220, 0.0
  %1225 = vadd.xlane.f32.xlu0 %v1224
  %v1226 = vpop.xlane.xlu0 %1225
  %v1227 = vmul.f32 %v1223, %v997
  %v1228 = vmul.f32 %v1226, %v997
  %v1229 = vadd.f32 %v1227, 1e-05
  %v1230 = vadd.f32 %v1228, 1e-05
  %v1231 = vrsqrt.pop %v1229
  %v1232 = vrsqrt.pop %v1230
  %v1233 = vmul.f32 %v1217, %v1231
  %v1234 = vmul.f32 %v1218, %v1232
  %v1235 = vlaneseq
  %v1236 = vshrl.u32 %v1235, 7
  %v1237 = vsub.s32 0, %v1236
  %v1238 = vrot.slane %v24, %v1237
  %v1239 = vmul.f32 %v1233, %v1238
  %v1240 = vmul.f32 %v1234, %v1238
  %v1241 = vlaneseq
  %v1242 = vshrl.u32 %v1241, 7
  %v1243 = vsub.s32 0, %v1242
  %v1244 = vrot.slane %v25, %v1243
  %v1245 = vadd.f32 %v1239, %v1244
  %v1246 = vadd.f32 %v1240, %v1244
  %1247 = vst.msk [vmem:[%s2] sm:$0xff] %vm35, %v1245
  %1248 = vst.msk [vmem:[%s2 + $0x8] sm:$0xff] %vm35, %v1246
  // Predicated region
  $region10: #{tpu_custom_call.1} parent=0 // pred_check
    _
  $region11: #{tpu_custom_call.1} parent=0 // pred_check_branch
    %1250 = sbr.rel (0) target = $region13
  $region12: #{tpu_custom_call.1} parent=0 // pred_region
    _
  $region13: #{tpu_custom_call.1} parent=0 // pred_fallthru
    _
  // Predicated region
  $region14: #{tpu_custom_call.1} parent=0 // pred_check
    _
  $region15: #{tpu_custom_call.1} parent=0 // pred_check_branch
    %1252 = sbr.rel (0) target = $region17
  $region16: #{tpu_custom_call.1} parent=0 // pred_region
    _
  $region17: #{tpu_custom_call.1} parent=0 // pred_fallthru
    _

</llo_original>
